<compile_context>
chip_gen: v5e
topology: v5e:2x2
jax: 0.10.0
libtpu: 0.0.40
codegen_flags: <defaults>
</compile_context>

<pallas_src>
import functools

import jax
import jax.numpy as jnp
from jax.experimental import pallas as pl
from jax.experimental.pallas import tpu as pltpu

PI = 3.141592653589793


def _pose_kernel(x_ref, coef_ref, out_ref, *, cx, cy):
    # x_ref:   (TB, HW)  flattened |image| rows for TB (batch, channel) slices
    # coef_ref:(HW, 8)   resident coefficients [1, xc, yc, xc^2, xc*yc, yc^2, 0, 0]
    #                    with xc = x - cx, yc = y - cy (image-center centered)
    # out_ref: (TB, 8)   -> [mu_x, mu_y, U00, U01, U10, U11, L1, L2]
    img = jnp.abs(x_ref[...])                      # torch.abs(img_tensor)

    # One MXU matmul replaces 6 XLU cross-lane reductions + a per-pixel sqrt.
    # HIGHEST precision keeps the f32 moment sums close to the reference.
    mom = jnp.dot(img, coef_ref[...],
                  preferred_element_type=jnp.float32,
                  precision=jax.lax.Precision.HIGHEST)        # (TB, 8)

    S   = mom[:, 0:1]      # sum W
    Sx  = mom[:, 1:2]      # sum W * xc
    Sy  = mom[:, 2:3]      # sum W * yc
    Sxx = mom[:, 3:4]      # sum W * xc^2
    Sxy = mom[:, 4:5]      # sum W * xc * yc
    Syy = mom[:, 5:6]      # sum W * yc^2

    # Weighted centroid: mu = sum(W*c)/sum(W) + 1e-4 (no eps in the
    # denominator, matching the PyTorch module).
    eps_mu = 1e-4
    inv_S = 1.0 / S
    dx = Sx * inv_S + eps_mu          # mu_x - cx
    dy = Sy * inv_S + eps_mu          # mu_y - cy
    mu_x = dx + cx
    mu_y = dy + cy

    # Scatter matrix of sqrt(W)*(C - mu) expanded around centered coordinates:
    # m_ij = sum(W * (c_i - mu_i)(c_j - mu_j))
    m00 = Sxx - 2.0 * dx * Sx + dx * dx * S
    m01 = Sxy - dx * Sy - dy * Sx + dx * dy * S
    m11 = Syy - 2.0 * dy * Sy + dy * dy * S
    m10 = m01

    # left_svd_tensor: scale by 1/(det + 1e-3), closed-form 2x2 eigenpairs
    det0 = m00 * m11 - m01 * m10
    inv = 1.0 / (det0 + 1e-3)
    a = m00 * inv
    b = m01 * inv
    c = m10 * inv
    d = m11 * inv
    tr = a + d
    det1 = a * d - b * c
    disc = jnp.sqrt(jnp.maximum(tr * tr - 4.0 * det1, 0.0))   # F.relu before sqrt
    L1 = (tr + disc) * 0.5
    L2 = (tr - disc) * 0.5

    # Eigenvectors v = (L - d, c), then F.normalize (eps = 1e-12).  Degenerate
    # (diagonal / isotropic) cases reproduce the reference behaviour exactly.
    v1x = L1 - d
    v1y = c
    v2x = L2 - d
    v2y = c
    n1 = jnp.maximum(jnp.sqrt(v1x * v1x + v1y * v1y), 1e-12)
    n2 = jnp.maximum(jnp.sqrt(v2x * v2x + v2y * v2y), 1e-12)
    u00 = v1x / n1
    u01 = v1y / n1
    u10 = v2x / n2
    u11 = v2y / n2

    out_ref[...] = jnp.concatenate(
        [mu_x, mu_y, u00, u01, u10, u11, L1, L2], axis=1)     # one (TB, 8) store


def _coef_matrix(H, W):
    """(H*W, 8) coefficient matrix, flattened row-major over (h, w)."""
    cx = (W - 1) / 2.0
    cy = (H - 1) / 2.0
    col = jnp.arange(W, dtype=jnp.float32)
    row = jnp.arange(H, dtype=jnp.float32)
    xg = jnp.broadcast_to(col[None, :], (H, W))               # x = column index
    yg = jnp.broadcast_to((H - 1.0) - row[:, None], (H, W))   # y = H - 1 - row
    xc = (xg - cx).reshape(-1)
    yc = (yg - cy).reshape(-1)
    ones = jnp.ones_like(xc)
    zeros = jnp.zeros_like(xc)
    return jnp.stack([ones, xc, yc, xc * xc, xc * yc, yc * yc, zeros, zeros],
                     axis=1)


def _choose_tb(n, hw):
    """Images per grid step: multiple of 8, ~<=4 MiB f32 input per block
    (safe for v7x's 64 MiB VMEM with double buffering), and >=2 grid steps
    when there is enough work (v7x has 2 TensorCores)."""
    n8 = ((n + 7) // 8) * 8
    budget_rows = max(8, ((4 << 20) // (hw * 4)) // 8 * 8)
    tb = min(512, budget_rows)
    if n8 >= 16:
        tb = min(tb, max(8, (n8 // 2) // 8 * 8))
    return min(tb, n8)


def _rot_mat_tensor(thetas):
    # thetas: (B, 1) -> R: (B, 2, 2, 1), matching rot_mat_tensor in the module
    c = jnp.cos(thetas)[:, :, None, None]          # (B, 1, 1, 1)
    s = jnp.sin(thetas)[:, :, None, None]
    row0 = jnp.concatenate([c, -s], axis=1)        # (B, 2, 1, 1)
    row1 = jnp.concatenate([s, c], axis=1)         # (B, 2, 1, 1)
    R = jnp.stack([row0, row1], axis=1)            # (B, 2, 2, 1, 1)
    return jnp.squeeze(R, axis=3)                  # (B, 2, 2, 1)


def weighted_multi_pose_extraction(img):
    """JAX/Pallas equivalent of WeightedMultiPoseExtraction.forward.

    img: (B, C, H, W) float32 (NCHW).
    Returns (mu_W, U, mu_avg, T_orig, theta, (L1, L2)) with the same shapes
    as the PyTorch module.
    """
    B, C, H, W = img.shape
    N = B * C
    HW = H * W
    x = img.reshape(N, HW).astype(jnp.float32)

    TB = _choose_tb(N, HW)
    n_pad = pl.cdiv(N, TB) * TB
    if n_pad != N:
        # zero rows -> NaN pose rows in the padded tail; sliced off below
        x = jnp.pad(x, ((0, n_pad - N), (0, 0)))

    coef = _coef_matrix(H, W)                      # (HW, 8), stays VMEM-resident
    cx = (W - 1) / 2.0
    cy = (H - 1) / 2.0
    kernel = functools.partial(_pose_kernel, cx=cx, cy=cy)

    pose = pl.pallas_call(
        kernel,
        out_shape=jax.ShapeDtypeStruct((n_pad, 8), jnp.float32),
        grid=(n_pad // TB,),
        in_specs=[
            pl.BlockSpec((TB, HW), lambda i: (i, 0)),
            pl.BlockSpec((HW, 8), lambda i: (0, 0)),   # constant block: no re-DMA
        ],
        out_specs=pl.BlockSpec((TB, 8), lambda i: (i, 0)),
        compiler_params=pltpu.CompilerParams(
            dimension_semantics=("parallel",)),
    )(x, coef)

    pose = pose[:N].reshape(B, C, 8)
    mu_W = pose[:, :, 0:2].reshape(B, C, 2, 1)     # weighted centroids
    U = pose[:, :, 2:6].reshape(B, C, 2, 2)        # normalized eigenvectors
    L1 = pose[:, :, 6]                             # (B, C)
    L2 = pose[:, :, 7]                             # (B, C)

    # deterministic conv2d params from __init__: weight = 1/C, bias = 0 (1x1 conv)
    conv_w = jnp.full((C,), 1.0 / C, dtype=jnp.float32)
    conv_b = jnp.zeros((1,), dtype=jnp.float32)

    # tensor_orientation_transform
    eps = 1e-4
    rot_lambda = jnp.fmod(
        jnp.arctan2(U[:, :, 0:1, 1:2], U[:, :, 0:1, 0:1] + eps) + 2.0 * PI, PI
    )  # (B, C, 1, 1)
    rlw = (jnp.einsum("bchw,c->bhw", rot_lambda, conv_w) + conv_b[0])[:, 0, :]  # (B, 1)
    theta_R = PI / 2.0
    diff_angle = theta_R - rlw
    rotation = _rot_mat_tensor(diff_angle)         # (B, 2, 2, 1)
    rotation_orig = _rot_mat_tensor(rlw)           # (B, 2, 2, 1)
    T = rotation[:, :, :, 0]                       # (B, 2, 2)
    T_orig = rotation_orig                         # (B, 2, 2, 1)

    # mu_avg = conv2d(mu_W)[:, 0, :, :]  (channel mean, 1x1 conv)
    mu_avg = jnp.einsum("bcij,c->bij", mu_W, conv_w) + conv_b[0]   # (B, 2, 1)

    img_scale_norm_mat = jnp.array([[1.0 / W, 0.0], [0.0, 1.0 / H]], jnp.float32)
    flip_y_loc = jnp.array([[2.0, 0.0], [0.0, -2.0]], jnp.float32)
    mu_R = jnp.array([0.5, 0.5], jnp.float32)

    mu_T = jnp.matmul(img_scale_norm_mat, mu_avg[:, :, 0].T).T     # (B, 2)
    mu_T = mu_T - mu_R
    mu_T = jnp.matmul(flip_y_loc, mu_T.T).T[:, :, None]            # (B, 2, 1)
    theta = jnp.concatenate([T, mu_T], axis=2)                     # (B, 2, 3)

    # TODO(synk): strength_cofficient (NaN check + raised Exception) is not part
    # of forward() and data-dependent host exceptions have no Pallas equivalent.
    return mu_W, U, mu_avg, T_orig, theta, (L1, L2)


if __name__ == "__main__":
    key = jax.random.PRNGKey(0)
    B, C, H, W = 2, 4, 16, 16
    img = jax.random.normal(key, (B, C, H, W), dtype=jnp.float32)

    out = weighted_multi_pose_extraction(img)
    out = jax.block_until_ready(out)

    mu_W, U, mu_avg, T_orig, theta, (L1, L2) = out
    assert mu_W.shape == (B, C, 2, 1)
    assert U.shape == (B, C, 2, 2)
    assert mu_avg.shape == (B, 2, 1)
    assert T_orig.shape == (B, 2, 2, 1)
    assert theta.shape == (B, 2, 3)
    assert L1.shape == (B, C) and L2.shape == (B, C)
    print("KERNEL_OK")
</pallas_src>

<mosaic_0001>
module attributes {stable_mosaic.version = 11 : i64} {
  func.func @_pose_kernel(%arg0: i32, %arg1: memref<8x256xf32, #tpu.memory_space<vmem>>, %arg2: memref<256x8xf32, #tpu.memory_space<vmem>>, %arg3: memref<8x8xf32, #tpu.memory_space<vmem>>) attributes {dimension_semantics = [#tpu.dimension_semantics<parallel>], iteration_bounds = array<i64: 1>, scalar_prefetch = 0 : i64, scratch_operands = 0 : i64, tpu.core_type = #tpu.core_type<tc>, window_params = [{transform_indices = @transform_0, window_bounds = array<i64: 8, 256>}, {pipeline_mode = #tpu.pipeline_mode<synchronous>, transform_indices = @transform_1, window_bounds = array<i64: 256, 8>}, {transform_indices = @transform_2, window_bounds = array<i64: 8, 8>}]} {
    %c0 = arith.constant 0 : index
    %c0_0 = arith.constant 0 : index
    %0 = vector.load %arg1[%c0, %c0_0] : memref<8x256xf32, #tpu.memory_space<vmem>>, vector<8x256xf32>
    %1 = math.absf %0 : vector<8x256xf32>
    %c0_1 = arith.constant 0 : index
    %c0_2 = arith.constant 0 : index
    %2 = vector.load %arg2[%c0_1, %c0_2] : memref<256x8xf32, #tpu.memory_space<vmem>>, vector<256x8xf32>
    %cst = arith.constant dense<0.000000e+00> : vector<8x8xf32>
    %3 = tpu.matmul %1, %2, %cst {dimension_numbers = #tpu.dot_dimension_numbers<[1], [0], [0], [1], [0, 0, 1, 1], [], []>, precision = #tpu.contract_precision<fp32>} : vector<8x256xf32>, vector<256x8xf32>, vector<8x8xf32> -> vector<8x8xf32>
    %4 = vector.extract_strided_slice %3 {offsets = [0, 0], sizes = [8, 1], strides = [1, 1]} : vector<8x8xf32> to vector<8x1xf32>
    %5 = vector.extract_strided_slice %3 {offsets = [0, 1], sizes = [8, 1], strides = [1, 1]} : vector<8x8xf32> to vector<8x1xf32>
    %6 = vector.extract_strided_slice %3 {offsets = [0, 2], sizes = [8, 1], strides = [1, 1]} : vector<8x8xf32> to vector<8x1xf32>
    %7 = vector.extract_strided_slice %3 {offsets = [0, 3], sizes = [8, 1], strides = [1, 1]} : vector<8x8xf32> to vector<8x1xf32>
    %8 = vector.extract_strided_slice %3 {offsets = [0, 4], sizes = [8, 1], strides = [1, 1]} : vector<8x8xf32> to vector<8x1xf32>
    %9 = vector.extract_strided_slice %3 {offsets = [0, 5], sizes = [8, 1], strides = [1, 1]} : vector<8x8xf32> to vector<8x1xf32>
    %cst_3 = arith.constant 1.000000e+00 : f32
    %10 = vector.broadcast %cst_3 : f32 to vector<8x1xf32>
    %11 = arith.divf %10, %4 : vector<8x1xf32>
    %12 = arith.mulf %5, %11 : vector<8x1xf32>
    %cst_4 = arith.constant 9.99999974E-5 : f32
    %13 = vector.broadcast %cst_4 : f32 to vector<8x1xf32>
    %14 = arith.addf %12, %13 : vector<8x1xf32>
    %15 = arith.mulf %6, %11 : vector<8x1xf32>
    %cst_5 = arith.constant 9.99999974E-5 : f32
    %16 = vector.broadcast %cst_5 : f32 to vector<8x1xf32>
    %17 = arith.addf %15, %16 : vector<8x1xf32>
    %cst_6 = arith.constant 7.500000e+00 : f32
    %18 = vector.broadcast %cst_6 : f32 to vector<8x1xf32>
    %19 = arith.addf %14, %18 : vector<8x1xf32>
    %cst_7 = arith.constant 7.500000e+00 : f32
    %20 = vector.broadcast %cst_7 : f32 to vector<8x1xf32>
    %21 = arith.addf %17, %20 : vector<8x1xf32>
    %cst_8 = arith.constant 2.000000e+00 : f32
    %22 = vector.broadcast %cst_8 : f32 to vector<8x1xf32>
    %23 = arith.mulf %22, %14 : vector<8x1xf32>
    %24 = arith.mulf %23, %5 : vector<8x1xf32>
    %25 = arith.subf %7, %24 : vector<8x1xf32>
    %26 = arith.mulf %14, %14 : vector<8x1xf32>
    %27 = arith.mulf %26, %4 : vector<8x1xf32>
    %28 = arith.addf %25, %27 : vector<8x1xf32>
    %29 = arith.mulf %14, %6 : vector<8x1xf32>
    %30 = arith.subf %8, %29 : vector<8x1xf32>
    %31 = arith.mulf %17, %5 : vector<8x1xf32>
    %32 = arith.subf %30, %31 : vector<8x1xf32>
    %33 = arith.mulf %14, %17 : vector<8x1xf32>
    %34 = arith.mulf %33, %4 : vector<8x1xf32>
    %35 = arith.addf %32, %34 : vector<8x1xf32>
    %cst_9 = arith.constant 2.000000e+00 : f32
    %36 = vector.broadcast %cst_9 : f32 to vector<8x1xf32>
    %37 = arith.mulf %36, %17 : vector<8x1xf32>
    %38 = arith.mulf %37, %6 : vector<8x1xf32>
    %39 = arith.subf %9, %38 : vector<8x1xf32>
    %40 = arith.mulf %17, %17 : vector<8x1xf32>
    %41 = arith.mulf %40, %4 : vector<8x1xf32>
    %42 = arith.addf %39, %41 : vector<8x1xf32>
    %43 = arith.mulf %28, %42 : vector<8x1xf32>
    %44 = arith.mulf %35, %35 : vector<8x1xf32>
    %45 = arith.subf %43, %44 : vector<8x1xf32>
    %cst_10 = arith.constant 1.000000e-03 : f32
    %46 = vector.broadcast %cst_10 : f32 to vector<8x1xf32>
    %47 = arith.addf %45, %46 : vector<8x1xf32>
    %cst_11 = arith.constant 1.000000e+00 : f32
    %48 = vector.broadcast %cst_11 : f32 to vector<8x1xf32>
    %49 = arith.divf %48, %47 : vector<8x1xf32>
    %50 = arith.mulf %28, %49 : vector<8x1xf32>
    %51 = arith.mulf %35, %49 : vector<8x1xf32>
    %52 = arith.mulf %35, %49 : vector<8x1xf32>
    %53 = arith.mulf %42, %49 : vector<8x1xf32>
    %54 = arith.addf %50, %53 : vector<8x1xf32>
    %55 = arith.mulf %50, %53 : vector<8x1xf32>
    %56 = arith.mulf %51, %52 : vector<8x1xf32>
    %57 = arith.subf %55, %56 : vector<8x1xf32>
    %58 = arith.mulf %54, %54 : vector<8x1xf32>
    %cst_12 = arith.constant 4.000000e+00 : f32
    %59 = vector.broadcast %cst_12 : f32 to vector<8x1xf32>
    %60 = arith.mulf %59, %57 : vector<8x1xf32>
    %61 = arith.subf %58, %60 : vector<8x1xf32>
    %cst_13 = arith.constant 0.000000e+00 : f32
    %62 = vector.broadcast %cst_13 : f32 to vector<8x1xf32>
    %63 = arith.maximumf %61, %62 : vector<8x1xf32>
    %64 = math.sqrt %63 : vector<8x1xf32>
    %65 = arith.addf %54, %64 : vector<8x1xf32>
    %cst_14 = arith.constant 5.000000e-01 : f32
    %66 = vector.broadcast %cst_14 : f32 to vector<8x1xf32>
    %67 = arith.mulf %65, %66 : vector<8x1xf32>
    %68 = arith.subf %54, %64 : vector<8x1xf32>
    %cst_15 = arith.constant 5.000000e-01 : f32
    %69 = vector.broadcast %cst_15 : f32 to vector<8x1xf32>
    %70 = arith.mulf %68, %69 : vector<8x1xf32>
    %71 = arith.subf %67, %53 : vector<8x1xf32>
    %72 = arith.subf %70, %53 : vector<8x1xf32>
    %73 = arith.mulf %71, %71 : vector<8x1xf32>
    %74 = arith.mulf %52, %52 : vector<8x1xf32>
    %75 = arith.addf %73, %74 : vector<8x1xf32>
    %76 = math.sqrt %75 : vector<8x1xf32>
    %cst_16 = arith.constant 9.99999996E-13 : f32
    %77 = vector.broadcast %cst_16 : f32 to vector<8x1xf32>
    %78 = arith.maximumf %76, %77 : vector<8x1xf32>
    %79 = arith.mulf %72, %72 : vector<8x1xf32>
    %80 = arith.mulf %52, %52 : vector<8x1xf32>
    %81 = arith.addf %79, %80 : vector<8x1xf32>
    %82 = math.sqrt %81 : vector<8x1xf32>
    %cst_17 = arith.constant 9.99999996E-13 : f32
    %83 = vector.broadcast %cst_17 : f32 to vector<8x1xf32>
    %84 = arith.maximumf %82, %83 : vector<8x1xf32>
    %85 = arith.divf %71, %78 : vector<8x1xf32>
    %86 = arith.divf %52, %78 : vector<8x1xf32>
    %87 = arith.divf %72, %84 : vector<8x1xf32>
    %88 = arith.divf %52, %84 : vector<8x1xf32>
    %89 = tpu.concatenate %19, %21, %85, %86, %87, %88, %67, %70 in 1 : vector<8x1xf32>, vector<8x1xf32>, vector<8x1xf32>, vector<8x1xf32>, vector<8x1xf32>, vector<8x1xf32>, vector<8x1xf32>, vector<8x1xf32> -> vector<8x8xf32>
    %c0_18 = arith.constant 0 : index
    %c0_19 = arith.constant 0 : index
    %90 = vector.load %arg3[%c0_18, %c0_19] : memref<8x8xf32, #tpu.memory_space<vmem>>, vector<8x8xf32>
    tpu.vector_store %arg3[%c0_18, %c0_19], %89 {strides = array<i32>} : memref<8x8xf32, #tpu.memory_space<vmem>>, vector<8x8xf32>,
    return
  }
  func.func @transform_0(%arg0: i32) -> (i32, i32) {
    %c0_i32 = arith.constant 0 : i32
    %c0_i32_0 = arith.constant 0 : i32
    return %arg0, %c0_i32 : i32, i32
  }
  func.func @transform_1(%arg0: i32) -> (i32, i32) {
    %c0_i32 = arith.constant 0 : i32
    %c0_i32_0 = arith.constant 0 : i32
    %c0_i32_1 = arith.constant 0 : i32
    return %c0_i32, %c0_i32_0 : i32, i32
  }
  func.func @transform_2(%arg0: i32) -> (i32, i32) {
    %c0_i32 = arith.constant 0 : i32
    %c0_i32_0 = arith.constant 0 : i32
    return %arg0, %c0_i32 : i32, i32
  }
}

</mosaic_0001>

<llo_original>
// kernel: tpu_custom_call.1
$region0: #{tpu_custom_call.1}
  #allocation0 [shape = 'u32[]', space=smem, size = 0x4, offset = 0x4, fixed_abs, tag = 'smem constant byte address 0x4 - core index']
  #allocation1 [shape = 'u32[72,128]{1,0:T(1,128)}', space=vmem, size = 0x9000, scoped, tag = 'internal scratch']
  %s0 = inlined_call_operand.vmem [shape: f32[8,256], index: 0, kind: input, shape index: {}]
  %s1 = inlined_call_operand.vmem [shape: f32[256,8], index: 1, kind: input, shape index: {}]
  %s2 = inlined_call_operand.hbm [shape: f32[8,8], index: 2, kind: output, shape index: {}]
  %s3 = sld [smem:[#allocation0]]
  $region18: #{tpu_custom_call.1} parent=0
    _
  %s5 = ssub.s32 1, %s3
  %s6 = scalar_select 0, %s5, %s3
  $region1: #{tpu_custom_call.1} parent=0
    #allocation2 [shape = 'u8[4096]{0}', space=vmem, size = 0x1000, scoped, tag = 'output window, operand 0, single buffered']
    #allocation3 [shape = 's32[1]{0}', space=sflag, size = 0x4, scoped, tag = 'scoped memory for tpu_custom_call.1']
    %7 = vsyncpa [#allocation3], 0
    // Predicated region
    $region2: #{tpu_custom_call.1} parent=1 // pred_check
      _
    $region3: #{tpu_custom_call.1} parent=1 // pred_check_branch
      %9 = sbr.rel (0) target = $region5
    $region4: #{tpu_custom_call.1} parent=1 // pred_region
      _
    $region5: #{tpu_custom_call.1} parent=1 // pred_fallthru
      _
    // Predicated region
    $region6: #{tpu_custom_call.1} parent=1 // pred_check
      _
    $region7: #{tpu_custom_call.1} parent=1 // pred_check_branch
      %11 = sbr.rel (0) target = $region9
    $region8: #{tpu_custom_call.1} parent=1 // pred_region
      _
    $region9: #{tpu_custom_call.1} parent=1 // pred_fallthru
      _
    %v12 = vld [vmem:[%s0] sm:$0xff]
    %v13 = vld [vmem:[%s0 + $0x8] sm:$0xff]
    %v14 = vand.u32 2147483647, %v12
    %v15 = vand.u32 2147483647, %v13
    %v16 = vld [vmem:[%s1] sm:$0xff]
    %v17 = vld [vmem:[%s1 + $0x8] sm:$0xff]
    %v18 = vld [vmem:[%s1 + $0x10] sm:$0xff]
    %v19 = vld [vmem:[%s1 + $0x18] sm:$0xff]
    %v20 = vld [vmem:[%s1 + $0x20] sm:$0xff]
    %v21 = vld [vmem:[%s1 + $0x28] sm:$0xff]
    %v22 = vld [vmem:[%s1 + $0x30] sm:$0xff]
    %v23 = vld [vmem:[%s1 + $0x38] sm:$0xff]
    %v24 = vld [vmem:[%s1 + $0x40] sm:$0xff]
    %v25 = vld [vmem:[%s1 + $0x48] sm:$0xff]
    %v26 = vld [vmem:[%s1 + $0x50] sm:$0xff]
    %v27 = vld [vmem:[%s1 + $0x58] sm:$0xff]
    %v28 = vld [vmem:[%s1 + $0x60] sm:$0xff]
    %v29 = vld [vmem:[%s1 + $0x68] sm:$0xff]
    %v30 = vld [vmem:[%s1 + $0x70] sm:$0xff]
    %v31 = vld [vmem:[%s1 + $0x78] sm:$0xff]
    %v32 = vld [vmem:[%s1 + $0x80] sm:$0xff]
    %v33 = vld [vmem:[%s1 + $0x88] sm:$0xff]
    %v34 = vld [vmem:[%s1 + $0x90] sm:$0xff]
    %v35 = vld [vmem:[%s1 + $0x98] sm:$0xff]
    %v36 = vld [vmem:[%s1 + $0xa0] sm:$0xff]
    %v37 = vld [vmem:[%s1 + $0xa8] sm:$0xff]
    %v38 = vld [vmem:[%s1 + $0xb0] sm:$0xff]
    %v39 = vld [vmem:[%s1 + $0xb8] sm:$0xff]
    %v40 = vld [vmem:[%s1 + $0xc0] sm:$0xff]
    %v41 = vld [vmem:[%s1 + $0xc8] sm:$0xff]
    %v42 = vld [vmem:[%s1 + $0xd0] sm:$0xff]
    %v43 = vld [vmem:[%s1 + $0xd8] sm:$0xff]
    %v44 = vld [vmem:[%s1 + $0xe0] sm:$0xff]
    %v45 = vld [vmem:[%s1 + $0xe8] sm:$0xff]
    %v46 = vld [vmem:[%s1 + $0xf0] sm:$0xff]
    %v47 = vld [vmem:[%s1 + $0xf8] sm:$0xff]
    %v48 = vand.u32 %v31, 4294901760
    %49 = vmatpush.msra.mxu0 %v48
    %v50 = vand.u32 %v30, 4294901760
    %51 = vmatpush.msra.mxu0 %v50
    %v52 = vand.u32 %v29, 4294901760
    %53 = vmatpush.msra.mxu0 %v52
    %v54 = vand.u32 %v28, 4294901760
    %55 = vmatpush.msra.mxu0 %v54
    %v56 = vand.u32 %v27, 4294901760
    %57 = vmatpush.msra.mxu0 %v56
    %v58 = vand.u32 %v26, 4294901760
    %59 = vmatpush.msra.mxu0 %v58
    %v60 = vand.u32 %v25, 4294901760
    %61 = vmatpush.msra.mxu0 %v60
    %v62 = vand.u32 %v24, 4294901760
    %63 = vmatpush.msra.mxu0 %v62
    %v64 = vand.u32 %v23, 4294901760
    %65 = vmatpush.msra.mxu0 %v64
    %v66 = vand.u32 %v22, 4294901760
    %67 = vmatpush.msra.mxu0 %v66
    %v68 = vand.u32 %v21, 4294901760
    %69 = vmatpush.msra.mxu0 %v68
    %v70 = vand.u32 %v20, 4294901760
    %71 = vmatpush.msra.mxu0 %v70
    %v72 = vand.u32 %v19, 4294901760
    %73 = vmatpush.msra.mxu0 %v72
    %v74 = vand.u32 %v18, 4294901760
    %75 = vmatpush.msra.mxu0 %v74
    %v76 = vand.u32 %v17, 4294901760
    %77 = vmatpush.msra.mxu0 %v76
    %v78 = vand.u32 %v16, 4294901760
    %79 = vmatpush.msra.mxu0 %v78
    %v80 = vand.u32 %v14, 4294901760
    %v81 = vsub.f32 %v14, %v80
    %v82 = vand.u32 %v81, 4294901760
    %v83 = vsub.f32 %v81, %v82
    %v84 = vand.u32 %v83, 4294901760
    %85 = vmatmul.f32.gmra.mxu0 %v84
    %v86 = vpop.f32.mrf.mxu0
    %v87 = vadd.f32 0.0, %v86
    %88 = vdwg.mxu0
    %v89 = vand.u32 %v31, 4294901760
    %v90 = vsub.f32 %v31, %v89
    %v91 = vand.u32 %v90, 4294901760
    %v92 = vsub.f32 %v90, %v91
    %v93 = vand.u32 %v92, 4294901760
    %94 = vmatpush.msra.mxu0 %v93
    %v95 = vand.u32 %v30, 4294901760
    %v96 = vsub.f32 %v30, %v95
    %v97 = vand.u32 %v96, 4294901760
    %v98 = vsub.f32 %v96, %v97
    %v99 = vand.u32 %v98, 4294901760
    %100 = vmatpush.msra.mxu0 %v99
    %v101 = vand.u32 %v29, 4294901760
    %v102 = vsub.f32 %v29, %v101
    %v103 = vand.u32 %v102, 4294901760
    %v104 = vsub.f32 %v102, %v103
    %v105 = vand.u32 %v104, 4294901760
    %106 = vmatpush.msra.mxu0 %v105
    %v107 = vand.u32 %v28, 4294901760
    %v108 = vsub.f32 %v28, %v107
    %v109 = vand.u32 %v108, 4294901760
    %v110 = vsub.f32 %v108, %v109
    %v111 = vand.u32 %v110, 4294901760
    %112 = vmatpush.msra.mxu0 %v111
    %v113 = vand.u32 %v27, 4294901760
    %v114 = vsub.f32 %v27, %v113
    %v115 = vand.u32 %v114, 4294901760
    %v116 = vsub.f32 %v114, %v115
    %v117 = vand.u32 %v116, 4294901760
    %118 = vmatpush.msra.mxu0 %v117
    %v119 = vand.u32 %v26, 4294901760
    %v120 = vsub.f32 %v26, %v119
    %v121 = vand.u32 %v120, 4294901760
    %v122 = vsub.f32 %v120, %v121
    %v123 = vand.u32 %v122, 4294901760
    %124 = vmatpush.msra.mxu0 %v123
    %v125 = vand.u32 %v25, 4294901760
    %v126 = vsub.f32 %v25, %v125
    %v127 = vand.u32 %v126, 4294901760
    %v128 = vsub.f32 %v126, %v127
    %v129 = vand.u32 %v128, 4294901760
    %130 = vmatpush.msra.mxu0 %v129
    %v131 = vand.u32 %v24, 4294901760
    %v132 = vsub.f32 %v24, %v131
    %v133 = vand.u32 %v132, 4294901760
    %v134 = vsub.f32 %v132, %v133
    %v135 = vand.u32 %v134, 4294901760
    %136 = vmatpush.msra.mxu0 %v135
    %v137 = vand.u32 %v23, 4294901760
    %v138 = vsub.f32 %v23, %v137
    %v139 = vand.u32 %v138, 4294901760
    %v140 = vsub.f32 %v138, %v139
    %v141 = vand.u32 %v140, 4294901760
    %142 = vmatpush.msra.mxu0 %v141
    %v143 = vand.u32 %v22, 4294901760
    %v144 = vsub.f32 %v22, %v143
    %v145 = vand.u32 %v144, 4294901760
    %v146 = vsub.f32 %v144, %v145
    %v147 = vand.u32 %v146, 4294901760
    %148 = vmatpush.msra.mxu0 %v147
    %v149 = vand.u32 %v21, 4294901760
    %v150 = vsub.f32 %v21, %v149
    %v151 = vand.u32 %v150, 4294901760
    %v152 = vsub.f32 %v150, %v151
    %v153 = vand.u32 %v152, 4294901760
    %154 = vmatpush.msra.mxu0 %v153
    %v155 = vand.u32 %v20, 4294901760
    %v156 = vsub.f32 %v20, %v155
    %v157 = vand.u32 %v156, 4294901760
    %v158 = vsub.f32 %v156, %v157
    %v159 = vand.u32 %v158, 4294901760
    %160 = vmatpush.msra.mxu0 %v159
    %v161 = vand.u32 %v19, 4294901760
    %v162 = vsub.f32 %v19, %v161
    %v163 = vand.u32 %v162, 4294901760
    %v164 = vsub.f32 %v162, %v163
    %v165 = vand.u32 %v164, 4294901760
    %166 = vmatpush.msra.mxu0 %v165
    %v167 = vand.u32 %v18, 4294901760
    %v168 = vsub.f32 %v18, %v167
    %v169 = vand.u32 %v168, 4294901760
    %v170 = vsub.f32 %v168, %v169
    %v171 = vand.u32 %v170, 4294901760
    %172 = vmatpush.msra.mxu0 %v171
    %v173 = vand.u32 %v17, 4294901760
    %v174 = vsub.f32 %v17, %v173
    %v175 = vand.u32 %v174, 4294901760
    %v176 = vsub.f32 %v174, %v175
    %v177 = vand.u32 %v176, 4294901760
    %178 = vmatpush.msra.mxu0 %v177
    %v179 = vand.u32 %v16, 4294901760
    %v180 = vsub.f32 %v16, %v179
    %v181 = vand.u32 %v180, 4294901760
    %v182 = vsub.f32 %v180, %v181
    %v183 = vand.u32 %v182, 4294901760
    %184 = vmatpush.msra.mxu0 %v183
    %v185 = vand.u32 %v14, 4294901760
    %186 = vmatmul.f32.gmra.mxu0 %v185
    %v187 = vpop.f32.mrf.mxu0
    %v188 = vadd.f32 %v87, %v187
    %189 = vdwg.mxu0
    %v190 = vand.u32 %v31, 4294901760
    %v191 = vsub.f32 %v31, %v190
    %192 = vmatpush.msra.mxu0 %v191
    %v193 = vand.u32 %v30, 4294901760
    %v194 = vsub.f32 %v30, %v193
    %195 = vmatpush.msra.mxu0 %v194
    %v196 = vand.u32 %v29, 4294901760
    %v197 = vsub.f32 %v29, %v196
    %198 = vmatpush.msra.mxu0 %v197
    %v199 = vand.u32 %v28, 4294901760
    %v200 = vsub.f32 %v28, %v199
    %201 = vmatpush.msra.mxu0 %v200
    %v202 = vand.u32 %v27, 4294901760
    %v203 = vsub.f32 %v27, %v202
    %204 = vmatpush.msra.mxu0 %v203
    %v205 = vand.u32 %v26, 4294901760
    %v206 = vsub.f32 %v26, %v205
    %207 = vmatpush.msra.mxu0 %v206
    %v208 = vand.u32 %v25, 4294901760
    %v209 = vsub.f32 %v25, %v208
    %210 = vmatpush.msra.mxu0 %v209
    %v211 = vand.u32 %v24, 4294901760
    %v212 = vsub.f32 %v24, %v211
    %213 = vmatpush.msra.mxu0 %v212
    %v214 = vand.u32 %v23, 4294901760
    %v215 = vsub.f32 %v23, %v214
    %216 = vmatpush.msra.mxu0 %v215
    %v217 = vand.u32 %v22, 4294901760
    %v218 = vsub.f32 %v22, %v217
    %219 = vmatpush.msra.mxu0 %v218
    %v220 = vand.u32 %v21, 4294901760
    %v221 = vsub.f32 %v21, %v220
    %222 = vmatpush.msra.mxu0 %v221
    %v223 = vand.u32 %v20, 4294901760
    %v224 = vsub.f32 %v20, %v223
    %225 = vmatpush.msra.mxu0 %v224
    %v226 = vand.u32 %v19, 4294901760
    %v227 = vsub.f32 %v19, %v226
    %228 = vmatpush.msra.mxu0 %v227
    %v229 = vand.u32 %v18, 4294901760
    %v230 = vsub.f32 %v18, %v229
    %231 = vmatpush.msra.mxu0 %v230
    %v232 = vand.u32 %v17, 4294901760
    %v233 = vsub.f32 %v17, %v232
    %234 = vmatpush.msra.mxu0 %v233
    %v235 = vand.u32 %v16, 4294901760
    %v236 = vsub.f32 %v16, %v235
    %237 = vmatpush.msra.mxu0 %v236
    %v238 = vand.u32 %v14, 4294901760
    %v239 = vsub.f32 %v14, %v238
    %240 = vmatmul.f32.gmra.mxu0 %v239
    %v241 = vpop.f32.mrf.mxu0
    %v242 = vadd.f32 %v188, %v241
    %243 = vdwg.mxu0
    %v244 = vand.u32 %v31, 4294901760
    %245 = vmatpush.msra.mxu0 %v244
    %v246 = vand.u32 %v30, 4294901760
    %247 = vmatpush.msra.mxu0 %v246
    %v248 = vand.u32 %v29, 4294901760
    %249 = vmatpush.msra.mxu0 %v248
    %v250 = vand.u32 %v28, 4294901760
    %251 = vmatpush.msra.mxu0 %v250
    %v252 = vand.u32 %v27, 4294901760
    %253 = vmatpush.msra.mxu0 %v252
    %v254 = vand.u32 %v26, 4294901760
    %255 = vmatpush.msra.mxu0 %v254
    %v256 = vand.u32 %v25, 4294901760
    %257 = vmatpush.msra.mxu0 %v256
    %v258 = vand.u32 %v24, 4294901760
    %259 = vmatpush.msra.mxu0 %v258
    %v260 = vand.u32 %v23, 4294901760
    %261 = vmatpush.msra.mxu0 %v260
    %v262 = vand.u32 %v22, 4294901760
    %263 = vmatpush.msra.mxu0 %v262
    %v264 = vand.u32 %v21, 4294901760
    %265 = vmatpush.msra.mxu0 %v264
    %v266 = vand.u32 %v20, 4294901760
    %267 = vmatpush.msra.mxu0 %v266
    %v268 = vand.u32 %v19, 4294901760
    %269 = vmatpush.msra.mxu0 %v268
    %v270 = vand.u32 %v18, 4294901760
    %271 = vmatpush.msra.mxu0 %v270
    %v272 = vand.u32 %v17, 4294901760
    %273 = vmatpush.msra.mxu0 %v272
    %v274 = vand.u32 %v16, 4294901760
    %275 = vmatpush.msra.mxu0 %v274
    %v276 = vand.u32 %v14, 4294901760
    %v277 = vsub.f32 %v14, %v276
    %v278 = vand.u32 %v277, 4294901760
    %279 = vmatmul.f32.gmra.mxu0 %v278
    %v280 = vpop.f32.mrf.mxu0
    %v281 = vadd.f32 %v242, %v280
    %282 = vdwg.mxu0
    %v283 = vand.u32 %v31, 4294901760
    %v284 = vsub.f32 %v31, %v283
    %v285 = vand.u32 %v284, 4294901760
    %286 = vmatpush.msra.mxu0 %v285
    %v287 = vand.u32 %v30, 4294901760
    %v288 = vsub.f32 %v30, %v287
    %v289 = vand.u32 %v288, 4294901760
    %290 = vmatpush.msra.mxu0 %v289
    %v291 = vand.u32 %v29, 4294901760
    %v292 = vsub.f32 %v29, %v291
    %v293 = vand.u32 %v292, 4294901760
    %294 = vmatpush.msra.mxu0 %v293
    %v295 = vand.u32 %v28, 4294901760
    %v296 = vsub.f32 %v28, %v295
    %v297 = vand.u32 %v296, 4294901760
    %298 = vmatpush.msra.mxu0 %v297
    %v299 = vand.u32 %v27, 4294901760
    %v300 = vsub.f32 %v27, %v299
    %v301 = vand.u32 %v300, 4294901760
    %302 = vmatpush.msra.mxu0 %v301
    %v303 = vand.u32 %v26, 4294901760
    %v304 = vsub.f32 %v26, %v303
    %v305 = vand.u32 %v304, 4294901760
    %306 = vmatpush.msra.mxu0 %v305
    %v307 = vand.u32 %v25, 4294901760
    %v308 = vsub.f32 %v25, %v307
    %v309 = vand.u32 %v308, 4294901760
    %310 = vmatpush.msra.mxu0 %v309
    %v311 = vand.u32 %v24, 4294901760
    %v312 = vsub.f32 %v24, %v311
    %v313 = vand.u32 %v312, 4294901760
    %314 = vmatpush.msra.mxu0 %v313
    %v315 = vand.u32 %v23, 4294901760
    %v316 = vsub.f32 %v23, %v315
    %v317 = vand.u32 %v316, 4294901760
    %318 = vmatpush.msra.mxu0 %v317
    %v319 = vand.u32 %v22, 4294901760
    %v320 = vsub.f32 %v22, %v319
    %v321 = vand.u32 %v320, 4294901760
    %322 = vmatpush.msra.mxu0 %v321
    %v323 = vand.u32 %v21, 4294901760
    %v324 = vsub.f32 %v21, %v323
    %v325 = vand.u32 %v324, 4294901760
    %326 = vmatpush.msra.mxu0 %v325
    %v327 = vand.u32 %v20, 4294901760
    %v328 = vsub.f32 %v20, %v327
    %v329 = vand.u32 %v328, 4294901760
    %330 = vmatpush.msra.mxu0 %v329
    %v331 = vand.u32 %v19, 4294901760
    %v332 = vsub.f32 %v19, %v331
    %v333 = vand.u32 %v332, 4294901760
    %334 = vmatpush.msra.mxu0 %v333
    %v335 = vand.u32 %v18, 4294901760
    %v336 = vsub.f32 %v18, %v335
    %v337 = vand.u32 %v336, 4294901760
    %338 = vmatpush.msra.mxu0 %v337
    %v339 = vand.u32 %v17, 4294901760
    %v340 = vsub.f32 %v17, %v339
    %v341 = vand.u32 %v340, 4294901760
    %342 = vmatpush.msra.mxu0 %v341
    %v343 = vand.u32 %v16, 4294901760
    %v344 = vsub.f32 %v16, %v343
    %v345 = vand.u32 %v344, 4294901760
    %346 = vmatpush.msra.mxu0 %v345
    %v347 = vand.u32 %v14, 4294901760
    %348 = vmatmul.f32.gmra.mxu0 %v347
    %v349 = vpop.f32.mrf.mxu0
    %v350 = vadd.f32 %v281, %v349
    %351 = vdwg.mxu0
    %v352 = vand.u32 %v31, 4294901760
    %353 = vmatpush.msra.mxu0 %v352
    %v354 = vand.u32 %v30, 4294901760
    %355 = vmatpush.msra.mxu0 %v354
    %v356 = vand.u32 %v29, 4294901760
    %357 = vmatpush.msra.mxu0 %v356
    %v358 = vand.u32 %v28, 4294901760
    %359 = vmatpush.msra.mxu0 %v358
    %v360 = vand.u32 %v27, 4294901760
    %361 = vmatpush.msra.mxu0 %v360
    %v362 = vand.u32 %v26, 4294901760
    %363 = vmatpush.msra.mxu0 %v362
    %v364 = vand.u32 %v25, 4294901760
    %365 = vmatpush.msra.mxu0 %v364
    %v366 = vand.u32 %v24, 4294901760
    %367 = vmatpush.msra.mxu0 %v366
    %v368 = vand.u32 %v23, 4294901760
    %369 = vmatpush.msra.mxu0 %v368
    %v370 = vand.u32 %v22, 4294901760
    %371 = vmatpush.msra.mxu0 %v370
    %v372 = vand.u32 %v21, 4294901760
    %373 = vmatpush.msra.mxu0 %v372
    %v374 = vand.u32 %v20, 4294901760
    %375 = vmatpush.msra.mxu0 %v374
    %v376 = vand.u32 %v19, 4294901760
    %377 = vmatpush.msra.mxu0 %v376
    %v378 = vand.u32 %v18, 4294901760
    %379 = vmatpush.msra.mxu0 %v378
    %v380 = vand.u32 %v17, 4294901760
    %381 = vmatpush.msra.mxu0 %v380
    %v382 = vand.u32 %v16, 4294901760
    %383 = vmatpush.msra.mxu0 %v382
    %v384 = vand.u32 %v14, 4294901760
    %385 = vmatmul.f32.gmra.mxu0 %v384
    %v386 = vpop.f32.mrf.mxu0
    %v387 = vadd.f32 %v350, %v386
    %388 = vdwg.mxu0
    %v389 = vand.u32 %v47, 4294901760
    %390 = vmatpush.msra.mxu0 %v389
    %v391 = vand.u32 %v46, 4294901760
    %392 = vmatpush.msra.mxu0 %v391
    %v393 = vand.u32 %v45, 4294901760
    %394 = vmatpush.msra.mxu0 %v393
    %v395 = vand.u32 %v44, 4294901760
    %396 = vmatpush.msra.mxu0 %v395
    %v397 = vand.u32 %v43, 4294901760
    %398 = vmatpush.msra.mxu0 %v397
    %v399 = vand.u32 %v42, 4294901760
    %400 = vmatpush.msra.mxu0 %v399
    %v401 = vand.u32 %v41, 4294901760
    %402 = vmatpush.msra.mxu0 %v401
    %v403 = vand.u32 %v40, 4294901760
    %404 = vmatpush.msra.mxu0 %v403
    %v405 = vand.u32 %v39, 4294901760
    %406 = vmatpush.msra.mxu0 %v405
    %v407 = vand.u32 %v38, 4294901760
    %408 = vmatpush.msra.mxu0 %v407
    %v409 = vand.u32 %v37, 4294901760
    %410 = vmatpush.msra.mxu0 %v409
    %v411 = vand.u32 %v36, 4294901760
    %412 = vmatpush.msra.mxu0 %v411
    %v413 = vand.u32 %v35, 4294901760
    %414 = vmatpush.msra.mxu0 %v413
    %v415 = vand.u32 %v34, 4294901760
    %416 = vmatpush.msra.mxu0 %v415
    %v417 = vand.u32 %v33, 4294901760
    %418 = vmatpush.msra.mxu0 %v417
    %v419 = vand.u32 %v32, 4294901760
    %420 = vmatpush.msra.mxu0 %v419
    %v421 = vand.u32 %v15, 4294901760
    %v422 = vsub.f32 %v15, %v421
    %v423 = vand.u32 %v422, 4294901760
    %v424 = vsub.f32 %v422, %v423
    %v425 = vand.u32 %v424, 4294901760
    %426 = vmatmul.f32.gmra.mxu0 %v425
    %v427 = vpop.f32.mrf.mxu0
    %v428 = vadd.f32 %v387, %v427
    %429 = vdwg.mxu0
    %v430 = vand.u32 %v47, 4294901760
    %v431 = vsub.f32 %v47, %v430
    %v432 = vand.u32 %v431, 4294901760
    %v433 = vsub.f32 %v431, %v432
    %v434 = vand.u32 %v433, 4294901760
    %435 = vmatpush.msra.mxu0 %v434
    %v436 = vand.u32 %v46, 4294901760
    %v437 = vsub.f32 %v46, %v436
    %v438 = vand.u32 %v437, 4294901760
    %v439 = vsub.f32 %v437, %v438
    %v440 = vand.u32 %v439, 4294901760
    %441 = vmatpush.msra.mxu0 %v440
    %v442 = vand.u32 %v45, 4294901760
    %v443 = vsub.f32 %v45, %v442
    %v444 = vand.u32 %v443, 4294901760
    %v445 = vsub.f32 %v443, %v444
    %v446 = vand.u32 %v445, 4294901760
    %447 = vmatpush.msra.mxu0 %v446
    %v448 = vand.u32 %v44, 4294901760
    %v449 = vsub.f32 %v44, %v448
    %v450 = vand.u32 %v449, 4294901760
    %v451 = vsub.f32 %v449, %v450
    %v452 = vand.u32 %v451, 4294901760
    %453 = vmatpush.msra.mxu0 %v452
    %v454 = vand.u32 %v43, 4294901760
    %v455 = vsub.f32 %v43, %v454
    %v456 = vand.u32 %v455, 4294901760
    %v457 = vsub.f32 %v455, %v456
    %v458 = vand.u32 %v457, 4294901760
    %459 = vmatpush.msra.mxu0 %v458
    %v460 = vand.u32 %v42, 4294901760
    %v461 = vsub.f32 %v42, %v460
    %v462 = vand.u32 %v461, 4294901760
    %v463 = vsub.f32 %v461, %v462
    %v464 = vand.u32 %v463, 4294901760
    %465 = vmatpush.msra.mxu0 %v464
    %v466 = vand.u32 %v41, 4294901760
    %v467 = vsub.f32 %v41, %v466
    %v468 = vand.u32 %v467, 4294901760
    %v469 = vsub.f32 %v467, %v468
    %v470 = vand.u32 %v469, 4294901760
    %471 = vmatpush.msra.mxu0 %v470
    %v472 = vand.u32 %v40, 4294901760
    %v473 = vsub.f32 %v40, %v472
    %v474 = vand.u32 %v473, 4294901760
    %v475 = vsub.f32 %v473, %v474
    %v476 = vand.u32 %v475, 4294901760
    %477 = vmatpush.msra.mxu0 %v476
    %v478 = vand.u32 %v39, 4294901760
    %v479 = vsub.f32 %v39, %v478
    %v480 = vand.u32 %v479, 4294901760
    %v481 = vsub.f32 %v479, %v480
    %v482 = vand.u32 %v481, 4294901760
    %483 = vmatpush.msra.mxu0 %v482
    %v484 = vand.u32 %v38, 4294901760
    %v485 = vsub.f32 %v38, %v484
    %v486 = vand.u32 %v485, 4294901760
    %v487 = vsub.f32 %v485, %v486
    %v488 = vand.u32 %v487, 4294901760
    %489 = vmatpush.msra.mxu0 %v488
    %v490 = vand.u32 %v37, 4294901760
    %v491 = vsub.f32 %v37, %v490
    %v492 = vand.u32 %v491, 4294901760
    %v493 = vsub.f32 %v491, %v492
    %v494 = vand.u32 %v493, 4294901760
    %495 = vmatpush.msra.mxu0 %v494
    %v496 = vand.u32 %v36, 4294901760
    %v497 = vsub.f32 %v36, %v496
    %v498 = vand.u32 %v497, 4294901760
    %v499 = vsub.f32 %v497, %v498
    %v500 = vand.u32 %v499, 4294901760
    %501 = vmatpush.msra.mxu0 %v500
    %v502 = vand.u32 %v35, 4294901760
    %v503 = vsub.f32 %v35, %v502
    %v504 = vand.u32 %v503, 4294901760
    %v505 = vsub.f32 %v503, %v504
    %v506 = vand.u32 %v505, 4294901760
    %507 = vmatpush.msra.mxu0 %v506
    %v508 = vand.u32 %v34, 4294901760
    %v509 = vsub.f32 %v34, %v508
    %v510 = vand.u32 %v509, 4294901760
    %v511 = vsub.f32 %v509, %v510
    %v512 = vand.u32 %v511, 4294901760
    %513 = vmatpush.msra.mxu0 %v512
    %v514 = vand.u32 %v33, 4294901760
    %v515 = vsub.f32 %v33, %v514
    %v516 = vand.u32 %v515, 4294901760
    %v517 = vsub.f32 %v515, %v516
    %v518 = vand.u32 %v517, 4294901760
    %519 = vmatpush.msra.mxu0 %v518
    %v520 = vand.u32 %v32, 4294901760
    %v521 = vsub.f32 %v32, %v520
    %v522 = vand.u32 %v521, 4294901760
    %v523 = vsub.f32 %v521, %v522
    %v524 = vand.u32 %v523, 4294901760
    %525 = vmatpush.msra.mxu0 %v524
    %v526 = vand.u32 %v15, 4294901760
    %527 = vmatmul.f32.gmra.mxu0 %v526
    %v528 = vpop.f32.mrf.mxu0
    %v529 = vadd.f32 %v428, %v528
    %530 = vdwg.mxu0
    %v531 = vand.u32 %v47, 4294901760
    %v532 = vsub.f32 %v47, %v531
    %533 = vmatpush.msra.mxu0 %v532
    %v534 = vand.u32 %v46, 4294901760
    %v535 = vsub.f32 %v46, %v534
    %536 = vmatpush.msra.mxu0 %v535
    %v537 = vand.u32 %v45, 4294901760
    %v538 = vsub.f32 %v45, %v537
    %539 = vmatpush.msra.mxu0 %v538
    %v540 = vand.u32 %v44, 4294901760
    %v541 = vsub.f32 %v44, %v540
    %542 = vmatpush.msra.mxu0 %v541
    %v543 = vand.u32 %v43, 4294901760
    %v544 = vsub.f32 %v43, %v543
    %545 = vmatpush.msra.mxu0 %v544
    %v546 = vand.u32 %v42, 4294901760
    %v547 = vsub.f32 %v42, %v546
    %548 = vmatpush.msra.mxu0 %v547
    %v549 = vand.u32 %v41, 4294901760
    %v550 = vsub.f32 %v41, %v549
    %551 = vmatpush.msra.mxu0 %v550
    %v552 = vand.u32 %v40, 4294901760
    %v553 = vsub.f32 %v40, %v552
    %554 = vmatpush.msra.mxu0 %v553
    %v555 = vand.u32 %v39, 4294901760
    %v556 = vsub.f32 %v39, %v555
    %557 = vmatpush.msra.mxu0 %v556
    %v558 = vand.u32 %v38, 4294901760
    %v559 = vsub.f32 %v38, %v558
    %560 = vmatpush.msra.mxu0 %v559
    %v561 = vand.u32 %v37, 4294901760
    %v562 = vsub.f32 %v37, %v561
    %563 = vmatpush.msra.mxu0 %v562
    %v564 = vand.u32 %v36, 4294901760
    %v565 = vsub.f32 %v36, %v564
    %566 = vmatpush.msra.mxu0 %v565
    %v567 = vand.u32 %v35, 4294901760
    %v568 = vsub.f32 %v35, %v567
    %569 = vmatpush.msra.mxu0 %v568
    %v570 = vand.u32 %v34, 4294901760
    %v571 = vsub.f32 %v34, %v570
    %572 = vmatpush.msra.mxu0 %v571
    %v573 = vand.u32 %v33, 4294901760
    %v574 = vsub.f32 %v33, %v573
    %575 = vmatpush.msra.mxu0 %v574
    %v576 = vand.u32 %v32, 4294901760
    %v577 = vsub.f32 %v32, %v576
    %578 = vmatpush.msra.mxu0 %v577
    %v579 = vand.u32 %v15, 4294901760
    %v580 = vsub.f32 %v15, %v579
    %581 = vmatmul.f32.gmra.mxu0 %v580
    %v582 = vpop.f32.mrf.mxu0
    %v583 = vadd.f32 %v529, %v582
    %584 = vdwg.mxu0
    %v585 = vand.u32 %v47, 4294901760
    %586 = vmatpush.msra.mxu0 %v585
    %v587 = vand.u32 %v46, 4294901760
    %588 = vmatpush.msra.mxu0 %v587
    %v589 = vand.u32 %v45, 4294901760
    %590 = vmatpush.msra.mxu0 %v589
    %v591 = vand.u32 %v44, 4294901760
    %592 = vmatpush.msra.mxu0 %v591
    %v593 = vand.u32 %v43, 4294901760
    %594 = vmatpush.msra.mxu0 %v593
    %v595 = vand.u32 %v42, 4294901760
    %596 = vmatpush.msra.mxu0 %v595
    %v597 = vand.u32 %v41, 4294901760
    %598 = vmatpush.msra.mxu0 %v597
    %v599 = vand.u32 %v40, 4294901760
    %600 = vmatpush.msra.mxu0 %v599
    %v601 = vand.u32 %v39, 4294901760
    %602 = vmatpush.msra.mxu0 %v601
    %v603 = vand.u32 %v38, 4294901760
    %604 = vmatpush.msra.mxu0 %v603
    %v605 = vand.u32 %v37, 4294901760
    %606 = vmatpush.msra.mxu0 %v605
    %v607 = vand.u32 %v36, 4294901760
    %608 = vmatpush.msra.mxu0 %v607
    %v609 = vand.u32 %v35, 4294901760
    %610 = vmatpush.msra.mxu0 %v609
    %v611 = vand.u32 %v34, 4294901760
    %612 = vmatpush.msra.mxu0 %v611
    %v613 = vand.u32 %v33, 4294901760
    %614 = vmatpush.msra.mxu0 %v613
    %v615 = vand.u32 %v32, 4294901760
    %616 = vmatpush.msra.mxu0 %v615
    %v617 = vand.u32 %v15, 4294901760
    %v618 = vsub.f32 %v15, %v617
    %v619 = vand.u32 %v618, 4294901760
    %620 = vmatmul.f32.gmra.mxu0 %v619
    %v621 = vpop.f32.mrf.mxu0
    %v622 = vadd.f32 %v583, %v621
    %623 = vdwg.mxu0
    %v624 = vand.u32 %v47, 4294901760
    %v625 = vsub.f32 %v47, %v624
    %v626 = vand.u32 %v625, 4294901760
    %627 = vmatpush.msra.mxu0 %v626
    %v628 = vand.u32 %v46, 4294901760
    %v629 = vsub.f32 %v46, %v628
    %v630 = vand.u32 %v629, 4294901760
    %631 = vmatpush.msra.mxu0 %v630
    %v632 = vand.u32 %v45, 4294901760
    %v633 = vsub.f32 %v45, %v632
    %v634 = vand.u32 %v633, 4294901760
    %635 = vmatpush.msra.mxu0 %v634
    %v636 = vand.u32 %v44, 4294901760
    %v637 = vsub.f32 %v44, %v636
    %v638 = vand.u32 %v637, 4294901760
    %639 = vmatpush.msra.mxu0 %v638
    %v640 = vand.u32 %v43, 4294901760
    %v641 = vsub.f32 %v43, %v640
    %v642 = vand.u32 %v641, 4294901760
    %643 = vmatpush.msra.mxu0 %v642
    %v644 = vand.u32 %v42, 4294901760
    %v645 = vsub.f32 %v42, %v644
    %v646 = vand.u32 %v645, 4294901760
    %647 = vmatpush.msra.mxu0 %v646
    %v648 = vand.u32 %v41, 4294901760
    %v649 = vsub.f32 %v41, %v648
    %v650 = vand.u32 %v649, 4294901760
    %651 = vmatpush.msra.mxu0 %v650
    %v652 = vand.u32 %v40, 4294901760
    %v653 = vsub.f32 %v40, %v652
    %v654 = vand.u32 %v653, 4294901760
    %655 = vmatpush.msra.mxu0 %v654
    %v656 = vand.u32 %v39, 4294901760
    %v657 = vsub.f32 %v39, %v656
    %v658 = vand.u32 %v657, 4294901760
    %659 = vmatpush.msra.mxu0 %v658
    %v660 = vand.u32 %v38, 4294901760
    %v661 = vsub.f32 %v38, %v660
    %v662 = vand.u32 %v661, 4294901760
    %663 = vmatpush.msra.mxu0 %v662
    %v664 = vand.u32 %v37, 4294901760
    %v665 = vsub.f32 %v37, %v664
    %v666 = vand.u32 %v665, 4294901760
    %667 = vmatpush.msra.mxu0 %v666
    %v668 = vand.u32 %v36, 4294901760
    %v669 = vsub.f32 %v36, %v668
    %v670 = vand.u32 %v669, 4294901760
    %671 = vmatpush.msra.mxu0 %v670
    %v672 = vand.u32 %v35, 4294901760
    %v673 = vsub.f32 %v35, %v672
    %v674 = vand.u32 %v673, 4294901760
    %675 = vmatpush.msra.mxu0 %v674
    %v676 = vand.u32 %v34, 4294901760
    %v677 = vsub.f32 %v34, %v676
    %v678 = vand.u32 %v677, 4294901760
    %679 = vmatpush.msra.mxu0 %v678
    %v680 = vand.u32 %v33, 4294901760
    %v681 = vsub.f32 %v33, %v680
    %v682 = vand.u32 %v681, 4294901760
    %683 = vmatpush.msra.mxu0 %v682
    %v684 = vand.u32 %v32, 4294901760
    %v685 = vsub.f32 %v32, %v684
    %v686 = vand.u32 %v685, 4294901760
    %687 = vmatpush.msra.mxu0 %v686
    %v688 = vand.u32 %v15, 4294901760
    %689 = vmatmul.f32.gmra.mxu0 %v688
    %v690 = vpop.f32.mrf.mxu0
    %v691 = vadd.f32 %v622, %v690
    %692 = vdwg.mxu0
    %v693 = vand.u32 %v47, 4294901760
    %694 = vmatpush.msra.mxu0 %v693
    %v695 = vand.u32 %v46, 4294901760
    %696 = vmatpush.msra.mxu0 %v695
    %v697 = vand.u32 %v45, 4294901760
    %698 = vmatpush.msra.mxu0 %v697
    %v699 = vand.u32 %v44, 4294901760
    %700 = vmatpush.msra.mxu0 %v699
    %v701 = vand.u32 %v43, 4294901760
    %702 = vmatpush.msra.mxu0 %v701
    %v703 = vand.u32 %v42, 4294901760
    %704 = vmatpush.msra.mxu0 %v703
    %v705 = vand.u32 %v41, 4294901760
    %706 = vmatpush.msra.mxu0 %v705
    %v707 = vand.u32 %v40, 4294901760
    %708 = vmatpush.msra.mxu0 %v707
    %v709 = vand.u32 %v39, 4294901760
    %710 = vmatpush.msra.mxu0 %v709
    %v711 = vand.u32 %v38, 4294901760
    %712 = vmatpush.msra.mxu0 %v711
    %v713 = vand.u32 %v37, 4294901760
    %714 = vmatpush.msra.mxu0 %v713
    %v715 = vand.u32 %v36, 4294901760
    %716 = vmatpush.msra.mxu0 %v715
    %v717 = vand.u32 %v35, 4294901760
    %718 = vmatpush.msra.mxu0 %v717
    %v719 = vand.u32 %v34, 4294901760
    %720 = vmatpush.msra.mxu0 %v719
    %v721 = vand.u32 %v33, 4294901760
    %722 = vmatpush.msra.mxu0 %v721
    %v723 = vand.u32 %v32, 4294901760
    %724 = vmatpush.msra.mxu0 %v723
    %v725 = vand.u32 %v15, 4294901760
    %726 = vmatmul.f32.gmra.mxu0 %v725
    %v727 = vpop.f32.mrf.mxu0
    %v728 = vadd.f32 %v691, %v727
    %729 = vdwg.mxu0
    %v730 = vrcp.pop %v728
    %v731 = vmul.f32 %v728, %v730
    %v732 = vsub.f32 1.0, %v731
    %v733 = vmul.f32 %v730, %v732
    %v734 = vadd.f32 %v730, %v733
    %vm735 = vweird.f32 %v728
    %vm736 = vweird.f32 %v730
    %vm737 = vmor %vm735, %vm736
    %v738 = vsel %vm737, %v730, %v734
    %v739 = vand.u32 2147483647, %v728
    %vm740 = vcmp.eq.f32.partialorder %v739, 8.507059e+37
    %v741 = vand.u32 %v728, 2147483648
    %v742 = vor.u32 1.1754944e-38, %v741
    %v743 = vsel %vm740, %v742, %v738
    %v744 = vmul.f32 1.0, %v743
    %746 = vrot.lane.b32.xlu0 %v744, 1
    %v747 = vpop.permute.xlu0 %746
    %v749 = vmul.f32 %v728, %v747
    %v750 = vadd.f32 %v749, 0.0001
    %751 = vrot.lane.b32.xlu0 %v744, 2
    %v752 = vpop.permute.xlu0 %751
    %v754 = vmul.f32 %v728, %v752
    %v755 = vadd.f32 %v754, 0.0001
    %v756 = vadd.f32 %v750, 7.5
    %v757 = vadd.f32 %v755, 7.5
    %v758 = vmul.f32 %v750, 2.0
    %v759 = vmul.f32 %v758, %v728
    %761 = vrot.lane.b32.xlu0 %v759, 2
    %v762 = vpop.permute.xlu0 %761
    %v764 = vsub.f32 %v728, %v762
    %v765 = vmul.f32 %v750, %v750
    %767 = vrot.lane.b32.xlu0 %v728, 1
    %v768 = vpop.permute.xlu0 %767
    %v770 = vmul.f32 %v765, %v768
    %772 = vrot.lane.b32.xlu0 %v770, 2
    %v773 = vpop.permute.xlu0 %772
    %v775 = vadd.f32 %v764, %v773
    %776 = vrot.lane.b32.xlu0 %v728, 127
    %v777 = vpop.permute.xlu0 %776
    %v779 = vmul.f32 %v750, %v777
    %781 = vrot.lane.b32.xlu0 %v779, 3
    %v782 = vpop.permute.xlu0 %781
    %v784 = vsub.f32 %v728, %v782
    %v785 = vmul.f32 %v755, %v768
    %787 = vrot.lane.b32.xlu0 %v785, 2
    %v788 = vpop.permute.xlu0 %787
    %v790 = vsub.f32 %v784, %v788
    %792 = vrot.lane.b32.xlu0 %v755, 127
    %v793 = vpop.permute.xlu0 %792
    %v795 = vmul.f32 %v750, %v793
    %v796 = vmul.f32 %v795, %v768
    %798 = vrot.lane.b32.xlu0 %v796, 3
    %v799 = vpop.permute.xlu0 %798
    %v801 = vadd.f32 %v790, %v799
    %v802 = vmul.f32 %v755, 2.0
    %v803 = vmul.f32 %v802, %v728
    %805 = vrot.lane.b32.xlu0 %v803, 3
    %v806 = vpop.permute.xlu0 %805
    %v808 = vsub.f32 %v728, %v806
    %v809 = vmul.f32 %v755, %v755
    %810 = vrot.lane.b32.xlu0 %v728, 2
    %v811 = vpop.permute.xlu0 %810
    %v813 = vmul.f32 %v809, %v811
    %815 = vrot.lane.b32.xlu0 %v813, 3
    %v816 = vpop.permute.xlu0 %815
    %v818 = vadd.f32 %v808, %v816
    %820 = vrot.lane.b32.xlu0 %v818, 126
    %v821 = vpop.permute.xlu0 %820
    %v823 = vmul.f32 %v775, %v821
    %v824 = vmul.f32 %v801, %v801
    %826 = vrot.lane.b32.xlu0 %v824, 127
    %v827 = vpop.permute.xlu0 %826
    %v829 = vsub.f32 %v823, %v827
    %v830 = vadd.f32 %v829, 0.001
    %v831 = vrcp.pop %v830
    %v832 = vmul.f32 %v830, %v831
    %v833 = vsub.f32 1.0, %v832
    %v834 = vmul.f32 %v831, %v833
    %v835 = vadd.f32 %v831, %v834
    %vm836 = vweird.f32 %v830
    %vm837 = vweird.f32 %v831
    %vm838 = vmor %vm836, %vm837
    %v839 = vsel %vm838, %v831, %v835
    %v840 = vand.u32 2147483647, %v830
    %vm841 = vcmp.eq.f32.partialorder %v840, 8.507059e+37
    %v842 = vand.u32 %v830, 2147483648
    %v843 = vor.u32 1.1754944e-38, %v842
    %v844 = vsel %vm841, %v843, %v839
    %v845 = vmul.f32 1.0, %v844
    %v846 = vmul.f32 %v775, %v845
    %848 = vrot.lane.b32.xlu0 %v845, 1
    %v849 = vpop.permute.xlu0 %848
    %v851 = vmul.f32 %v801, %v849
    %852 = vrot.lane.b32.xlu0 %v845, 2
    %v853 = vpop.permute.xlu0 %852
    %v855 = vmul.f32 %v818, %v853
    %857 = vrot.lane.b32.xlu0 %v855, 126
    %v858 = vpop.permute.xlu0 %857
    %v860 = vadd.f32 %v846, %v858
    %v861 = vmul.f32 %v846, %v858
    %v862 = vmul.f32 %v851, %v851
    %864 = vrot.lane.b32.xlu0 %v862, 127
    %v865 = vpop.permute.xlu0 %864
    %v867 = vsub.f32 %v861, %v865
    %v868 = vmul.f32 %v860, %v860
    %v869 = vmul.f32 %v867, 4.0
    %v870 = vsub.f32 %v868, %v869
    %v871 = vmax.f32 %v870, 0.0
    %v872 = vrsqrt.pop %v871
    %v873 = vmul.f32 %v872, %v871
    %v874 = vmul.f32 %v873, %v872
    %v875 = vmul.f32 0.5, %v874
    %v876 = vsub.f32 1.5, %v875
    %v877 = vmul.f32 %v872, %v876
    %v878 = vmul.f32 %v871, %v877
    %vm879 = vcmp.eq.f32.partialorder %v871, inf
    %v880 = vsel %vm879, %v871, %v878
    %vm881 = vcmp.eq.f32.partialorder %v871, 0.0
    %v882 = vand.u32 %v871, 2147483648
    %v883 = vsel %vm881, %v882, %v880
    %v884 = vadd.f32 %v860, %v883
    %v885 = vmul.f32 %v884, 0.5
    %v886 = vsub.f32 %v860, %v883
    %v887 = vmul.f32 %v886, 0.5
    %v888 = vsub.f32 %v885, %v858
    %v889 = vsub.f32 %v887, %v858
    %v890 = vmul.f32 %v888, %v888
    %v891 = vadd.f32 %v890, %v865
    %v892 = vrsqrt.pop %v891
    %v893 = vmul.f32 %v892, %v891
    %v894 = vmul.f32 %v893, %v892
    %v895 = vmul.f32 0.5, %v894
    %v896 = vsub.f32 1.5, %v895
    %v897 = vmul.f32 %v892, %v896
    %v898 = vmul.f32 %v891, %v897
    %vm899 = vcmp.eq.f32.partialorder %v891, inf
    %v900 = vsel %vm899, %v891, %v898
    %vm901 = vcmp.eq.f32.partialorder %v891, 0.0
    %v902 = vand.u32 %v891, 2147483648
    %v903 = vsel %vm901, %v902, %v900
    %v904 = vmax.f32 %v903, 1e-12
    %v905 = vmul.f32 %v889, %v889
    %v906 = vadd.f32 %v905, %v865
    %v907 = vrsqrt.pop %v906
    %v908 = vmul.f32 %v907, %v906
    %v909 = vmul.f32 %v908, %v907
    %v910 = vmul.f32 0.5, %v909
    %v911 = vsub.f32 1.5, %v910
    %v912 = vmul.f32 %v907, %v911
    %v913 = vmul.f32 %v906, %v912
    %vm914 = vcmp.eq.f32.partialorder %v906, inf
    %v915 = vsel %vm914, %v906, %v913
    %vm916 = vcmp.eq.f32.partialorder %v906, 0.0
    %v917 = vand.u32 %v906, 2147483648
    %v918 = vsel %vm916, %v917, %v915
    %v919 = vmax.f32 %v918, 1e-12
    %v920 = vrcp.pop %v904
    %v921 = vmul.f32 %v904, %v920
    %v922 = vsub.f32 1.0, %v921
    %v923 = vmul.f32 %v920, %v922
    %v924 = vadd.f32 %v920, %v923
    %vm925 = vweird.f32 %v904
    %vm926 = vweird.f32 %v920
    %vm927 = vmor %vm925, %vm926
    %v928 = vsel %vm927, %v920, %v924
    %v929 = vand.u32 2147483647, %v904
    %vm930 = vcmp.eq.f32.partialorder %v929, 8.507059e+37
    %v931 = vand.u32 %v904, 2147483648
    %v932 = vor.u32 1.1754944e-38, %v931
    %v933 = vsel %vm930, %v932, %v928
    %v934 = vmul.f32 %v888, %v933
    %936 = vrot.lane.b32.xlu0 %v904, 1
    %v937 = vpop.permute.xlu0 %936
    %v939 = vrcp.pop %v937
    %v940 = vmul.f32 %v937, %v939
    %v941 = vsub.f32 1.0, %v940
    %v942 = vmul.f32 %v939, %v941
    %v943 = vadd.f32 %v939, %v942
    %vm944 = vweird.f32 %v937
    %vm945 = vweird.f32 %v939
    %vm946 = vmor %vm944, %vm945
    %v947 = vsel %vm946, %v939, %v943
    %v948 = vand.u32 2147483647, %v937
    %vm949 = vcmp.eq.f32.partialorder %v948, 8.507059e+37
    %v950 = vand.u32 %v937, 2147483648
    %v951 = vor.u32 1.1754944e-38, %v950
    %v952 = vsel %vm949, %v951, %v947
    %v953 = vmul.f32 %v851, %v952
    %v954 = vrcp.pop %v919
    %v955 = vmul.f32 %v919, %v954
    %v956 = vsub.f32 1.0, %v955
    %v957 = vmul.f32 %v954, %v956
    %v958 = vadd.f32 %v954, %v957
    %vm959 = vweird.f32 %v919
    %vm960 = vweird.f32 %v954
    %vm961 = vmor %vm959, %vm960
    %v962 = vsel %vm961, %v954, %v958
    %v963 = vand.u32 2147483647, %v919
    %vm964 = vcmp.eq.f32.partialorder %v963, 8.507059e+37
    %v965 = vand.u32 %v919, 2147483648
    %v966 = vor.u32 1.1754944e-38, %v965
    %v967 = vsel %vm964, %v966, %v962
    %v968 = vmul.f32 %v889, %v967
    %970 = vrot.lane.b32.xlu0 %v919, 1
    %v971 = vpop.permute.xlu0 %970
    %v973 = vrcp.pop %v971
    %v974 = vmul.f32 %v971, %v973
    %v975 = vsub.f32 1.0, %v974
    %v976 = vmul.f32 %v973, %v975
    %v977 = vadd.f32 %v973, %v976
    %vm978 = vweird.f32 %v971
    %vm979 = vweird.f32 %v973
    %vm980 = vmor %vm978, %vm979
    %v981 = vsel %vm980, %v973, %v977
    %v982 = vand.u32 2147483647, %v971
    %vm983 = vcmp.eq.f32.partialorder %v982, 8.507059e+37
    %v984 = vand.u32 %v971, 2147483648
    %v985 = vor.u32 1.1754944e-38, %v984
    %v986 = vsel %vm983, %v985, %v981
    %v987 = vmul.f32 %v851, %v986
    %989 = vrot.lane.b32.xlu0 %v756, 127
    %v990 = vpop.permute.xlu0 %989
    %993 = vrot.lane.b32.xlu0 %v757, 127
    %v994 = vpop.permute.xlu0 %993
    %997 = vrot.lane.b32.xlu0 %v934, 127
    %v998 = vpop.permute.xlu0 %997
    %1001 = vrot.lane.b32.xlu0 %v953, 127
    %v1002 = vpop.permute.xlu0 %1001
    %1005 = vrot.lane.b32.xlu0 %v968, 1
    %v1006 = vpop.permute.xlu0 %1005
    %1009 = vrot.lane.b32.xlu0 %v987, 1
    %v1010 = vpop.permute.xlu0 %1009
    %1013 = vrot.lane.b32.xlu0 %v885, 3
    %v1014 = vpop.permute.xlu0 %1013
    %1017 = vrot.lane.b32.xlu0 %v887, 4
    %v1018 = vpop.permute.xlu0 %1017
    %vm1020 = vcmask 7168
    %v1021 = vsel %vm1020, %v990, %v994
    %vm1022 = vcmask 15360
    %v1023 = vsel %vm1022, %v1021, %v998
    %vm1024 = vcmask 23552
    %v1025 = vsel %vm1024, %v1023, %v1002
    %vm1026 = vcmask 31744
    %v1027 = vsel %vm1026, %v1025, %v1006
    %vm1028 = vcmask 39936
    %v1029 = vsel %vm1028, %v1027, %v1010
    %vm1030 = vcmask 48128
    %v1031 = vsel %vm1030, %v1029, %v1014
    %vm1032 = vcmask 56320
    %v1033 = vsel %vm1032, %v1031, %v1018
    %vm1034 = vcmask 64512
    %1035 = vst.msk [vmem:[#allocation2] sm:$0xff] %vm1034, %v1033
    // Predicated region
    $region10: #{tpu_custom_call.1} parent=1 // pred_check
      _
    $region11: #{tpu_custom_call.1} parent=1 // pred_check_branch
      %1037 = sbr.rel (0) target = $region13
    $region12: #{tpu_custom_call.1} parent=1 // pred_region
      %1039 = vsyncadd [#allocation3], 0
      %s1041 = sshll.u32 [#allocation2], 4
      %s1042 = int_to_ptr.vmem [resolvable:$true] %s1041
      %s1043 = sshll.u32 %s2, 4
      %s1044 = int_to_ptr.hbm [resolvable:$true] %s1043
      %1046 = dma.vmem_to_hbm [thread:$0]  %s1042, 128, %s1044, [#allocation3]
    $region13: #{tpu_custom_call.1} parent=1 // pred_fallthru
      _
    // Predicated region
    $region14: #{tpu_custom_call.1} parent=1 // pred_check
      _
    $region15: #{tpu_custom_call.1} parent=1 // pred_check_branch
      %1048 = sbr.rel (0) target = $region17
    $region16: #{tpu_custom_call.1} parent=1 // pred_region
      %1050 = dma.done [#allocation3], 128
    $region17: #{tpu_custom_call.1} parent=1 // pred_fallthru
      _
    %1051 = vsyncpa [#allocation3], 1

</llo_original>
